<compile_context>
chip_gen: v7x
topology: tpu7x:2x2x1
jax: 0.10.0
libtpu: 0.0.40
codegen_flags: <defaults>
</compile_context>

<pallas_src>
import functools

import jax
import jax.numpy as jnp
from jax import lax
from jax.experimental import pallas as pl
from jax.experimental.pallas import tpu as pltpu

LANES = 128
SUBLANES = 8


def _mse_partial_kernel(yhat_ref, y_ref, out_ref, acc_ref, *,
                        block_rows, blocks_per_split, rows_valid,
                        inv_n, needs_mask):
    s = pl.program_id(0)   # TensorCore split ("parallel"; >1 only on v7x)
    j = pl.program_id(1)   # streaming reduction steps ("arbitrary")

    @pl.when(j == 0)
    def _():
        acc_ref[...] = jnp.zeros_like(acc_ref)

    d = yhat_ref[...].astype(jnp.float32) - y_ref[...].astype(jnp.float32)

    def accumulate(vals):
        # Tile-aligned reshape + leading-axis sum collapses the block-sized
        # (d*d) slab into one (8, 128) vreg of per-lane partial sums (pure
        # VALU adds, no XLU) before touching the tiny accumulator.
        acc_ref[...] += (vals * vals).reshape(
            block_rows // SUBLANES, SUBLANES, LANES).sum(axis=0)

    if needs_mask:
        logical_block = s * blocks_per_split + j
        block_row_end = (logical_block + 1) * block_rows   # row units: int32-safe

        @pl.when(block_row_end <= rows_valid)   # fully in-bounds: no mask ops
        def _():
            accumulate(d)

        @pl.when(block_row_end > rows_valid)    # boundary / clamped overrun block
        def _():
            row = lax.broadcasted_iota(jnp.int32, (block_rows, LANES), 0)
            global_row = logical_block * block_rows + row
            accumulate(jnp.where(global_row < rows_valid, d, 0.0))
    else:
        accumulate(d)

    @pl.when(j == pl.num_programs(1) - 1)
    def _():
        # Fold the 1/N mean scale into the per-split (8, 128) partial write.
        out_ref[...] = acc_ref[...] * inv_n


def _default_num_splits():
    # The leading "parallel" grid axis only pays off on chips exposing two
    # TensorCores to one Pallas kernel (v7x).  On single-core chips (v5e/v6e)
    # a second split is a serial outer loop that adds one redundant clamped
    # block read plus mask work, so default to 1 there.
    try:
        kind = jax.devices()[0].device_kind.lower()
    except Exception:
        return 1
    return 2 if "v7" in kind else 1


def mse_loss_with_sparsity_regularizer(yhat, y, alpha: float, *,
                                       max_block_rows: int = 4096,
                                       num_splits=None,
                                       min_pallas_elements: int = 1 << 17):
    """Pallas implementation of MSELossWithSparsityRegularizer_GGRNN.forward.

    Returns an array of shape (1,), matching torch's `scalar + zeros(1)`.
    """
    assert yhat.shape == y.shape, "yhat and y must have the same shape"
    n_total = int(yhat.size)
    assert n_total > 0

    def finalize(mse):
        # regularization_loss is identically zero in the reference module;
        # alpha multiplies a zero term (constant-folded by XLA).
        final = mse + jnp.float32(alpha) * jnp.float32(0.0)
        return final.astype(jnp.float32).reshape(1)

    rows = n_total // LANES
    # Small-input fast path: below ~1e5 elements pallas_call dispatch and
    # per-step overhead dominate; a fused XLA reduction is strictly faster.
    if n_total < min_pallas_elements or rows == 0:
        d = yhat.astype(jnp.float32) - y.astype(jnp.float32)
        return finalize(jnp.sum(d * d) / jnp.float32(n_total))

    flat_yhat = yhat.reshape(-1)              # free (contiguous)
    flat_y = y.reshape(-1)
    n_main = rows * LANES
    rem = n_total - n_main                    # < 128 trailing elements

    if rem:
        # Handle the tiny tail wrapper-side instead of jnp.pad-copying both
        # full inputs; the kernel only sees the 128-aligned prefix.
        td = (flat_yhat[n_main:].astype(jnp.float32)
              - flat_y[n_main:].astype(jnp.float32))
        tail_sq = jnp.sum(td * td)
        yhat2d = flat_yhat[:n_main].reshape(rows, LANES)
        y2d = flat_y[:n_main].reshape(rows, LANES)
    else:
        tail_sq = None
        yhat2d = flat_yhat.reshape(rows, LANES)
        y2d = flat_y.reshape(rows, LANES)

    # Block sizing: big lane-dense blocks (default 4096 x 128 = 2 MiB f32 per
    # input per step).  Double-buffered input footprint <= 8 MiB f32 plus a
    # 4 KiB accumulator, inside every generation's scoped-VMEM default, so no
    # vmem_limit_bytes override is needed.
    rows8 = pl.cdiv(rows, SUBLANES) * SUBLANES
    block_rows = min(max_block_rows, rows8)            # multiple of 8
    nblocks = pl.cdiv(rows, block_rows)
    if num_splits is None:
        num_splits = _default_num_splits()
    splits = max(1, min(int(num_splits), nblocks))
    bps = pl.cdiv(nblocks, splits)                     # blocks per split

    covered_rows = splits * bps * block_rows
    needs_mask = covered_rows != rows                  # boundary/overrun blocks

    def in_map(s, j):
        # Clamp so no block index is ever fully out of range; the in-kernel
        # row mask zeroes any re-read / garbage data of clamped & edge blocks.
        return (jnp.minimum(s * bps + j, nblocks - 1), 0)

    kernel = functools.partial(
        _mse_partial_kernel,
        block_rows=block_rows,
        blocks_per_split=bps,
        rows_valid=rows,
        inv_n=1.0 / n_total,
        needs_mask=needs_mask,
    )

    in_bytes = 2 * n_main * yhat2d.dtype.itemsize
    out_bytes = splits * SUBLANES * LANES * 4

    partials = pl.pallas_call(
        kernel,
        out_shape=jax.ShapeDtypeStruct((splits * SUBLANES, LANES), jnp.float32),
        grid_spec=pltpu.PrefetchScalarGridSpec(
            num_scalar_prefetch=0,
            grid=(splits, bps),
            in_specs=[
                pl.BlockSpec((block_rows, LANES), in_map),
                pl.BlockSpec((block_rows, LANES), in_map),
            ],
            out_specs=pl.BlockSpec((SUBLANES, LANES), lambda s, j: (s, 0)),
            scratch_shapes=[pltpu.VMEM((SUBLANES, LANES), jnp.float32)],
        ),
        compiler_params=pltpu.CompilerParams(
            dimension_semantics=("parallel", "arbitrary"),
        ),
        cost_estimate=pl.CostEstimate(
            flops=3 * n_main, transcendentals=0,
            bytes_accessed=in_bytes + out_bytes),
    )(yhat2d, y2d)

    mse = jnp.sum(partials)                    # 1/N already folded in-kernel
    if rem:
        mse = mse + tail_sq / jnp.float32(n_total)
    return finalize(mse)


if __name__ == "__main__":
    key = jax.random.PRNGKey(0)
    k1, k2, k3, k4 = jax.random.split(key, 4)

    alpha = 0.5  # sparsity-regularizer weight (multiplies an identically-zero term)

    def ref_loss(a, b):
        d = a.astype(jnp.float32) - b.astype(jnp.float32)
        return jnp.mean(d * d).reshape(1)

    # 1) Small NCHW-like prediction/target tensors (GGRNN output over a graph);
    #    force the Pallas path so the kernel itself is exercised.
    B, C, H, W = 2, 4, 16, 16
    yhat = jax.random.normal(k1, (B, C, H, W), dtype=jnp.float32)
    y = jax.random.normal(k2, (B, C, H, W), dtype=jnp.float32)
    loss = jax.block_until_ready(
        mse_loss_with_sparsity_regularizer(yhat, y, alpha, min_pallas_elements=0))
    assert loss.shape == (1,)
    assert jnp.allclose(loss, ref_loss(yhat, y), rtol=1e-5, atol=1e-6), (
        loss, ref_loss(yhat, y))

    # 2) Non-128-multiple size: exercises the wrapper tail path and the
    #    in-kernel row mask on the partial boundary block (no jnp.pad copy).
    yhat2 = jax.random.normal(k3, (2, 3, 10, 7), dtype=jnp.float32)
    y2 = jax.random.normal(k4, (2, 3, 10, 7), dtype=jnp.float32)
    loss2 = jax.block_until_ready(
        mse_loss_with_sparsity_regularizer(yhat2, y2, alpha, min_pallas_elements=0))
    assert jnp.allclose(loss2, ref_loss(yhat2, y2), rtol=1e-5, atol=1e-6), (
        loss2, ref_loss(yhat2, y2))

    # 3) Multi-step accumulation + forced 2-way split with a clamped overrun
    #    block (tiny blocks so the grid has several reduction steps).
    k5, k6 = jax.random.split(k4)
    yhat3 = jax.random.normal(k5, (1, 1, 17, 128), dtype=jnp.float32)
    y3 = jax.random.normal(k6, (1, 1, 17, 128), dtype=jnp.float32)
    loss3 = jax.block_until_ready(
        mse_loss_with_sparsity_regularizer(
            yhat3, y3, alpha, max_block_rows=8, num_splits=2,
            min_pallas_elements=0))
    assert jnp.allclose(loss3, ref_loss(yhat3, y3), rtol=1e-5, atol=1e-6), (
        loss3, ref_loss(yhat3, y3))

    # 4) Default small-input fast path (no pallas_call) matches the kernel path.
    loss4 = jax.block_until_ready(
        mse_loss_with_sparsity_regularizer(yhat, y, alpha))
    assert jnp.allclose(loss4, loss, rtol=1e-5, atol=1e-6), (loss4, loss)

    print("KERNEL_OK")
</pallas_src>

<mosaic_0001>
module attributes {stable_mosaic.version = 11 : i64} {
  func.func @_mse_partial_kernel(%arg0: i32, %arg1: i32, %arg2: memref<16x128xf32, #tpu.memory_space<vmem>>, %arg3: memref<16x128xf32, #tpu.memory_space<vmem>>, %arg4: memref<8x128xf32, #tpu.memory_space<vmem>>, %arg5: memref<8x128xf32, #tpu.memory_space<vmem>>) attributes {dimension_semantics = [#tpu.dimension_semantics<parallel>, #tpu.dimension_semantics<arbitrary>], iteration_bounds = array<i64: 1, 1>, scalar_prefetch = 0 : i64, scratch_operands = 1 : i64, tpu.core_type = #tpu.core_type<tc>, window_params = [{transform_indices = @transform_0, window_bounds = array<i64: 16, 128>}, {transform_indices = @transform_1, window_bounds = array<i64: 16, 128>}, {transform_indices = @transform_2, window_bounds = array<i64: 8, 128>}]} {
    %c0_i32 = arith.constant 0 : i32
    %0 = arith.cmpi eq, %arg1, %c0_i32 : i32
    %1 = arith.extui %0 : i1 to i32
    %c0_i32_0 = arith.constant 0 : i32
    %2 = arith.cmpi ne, %1, %c0_i32_0 : i32
    scf.if %2 {
      %cst_10 = arith.constant 0.000000e+00 : f32
      %15 = vector.broadcast %cst_10 : f32 to vector<8x128xf32>
      %c0_11 = arith.constant 0 : index
      %c0_12 = arith.constant 0 : index
      %16 = vector.load %arg5[%c0_11, %c0_12] : memref<8x128xf32, #tpu.memory_space<vmem>>, vector<8x128xf32>
      tpu.vector_store %arg5[%c0_11, %c0_12], %15 {strides = array<i32>} : memref<8x128xf32, #tpu.memory_space<vmem>>, vector<8x128xf32>,
    } else {
    }
    %c0 = arith.constant 0 : index
    %c0_1 = arith.constant 0 : index
    %3 = vector.load %arg2[%c0, %c0_1] : memref<16x128xf32, #tpu.memory_space<vmem>>, vector<16x128xf32>
    %c0_2 = arith.constant 0 : index
    %c0_3 = arith.constant 0 : index
    %4 = vector.load %arg3[%c0_2, %c0_3] : memref<16x128xf32, #tpu.memory_space<vmem>>, vector<16x128xf32>
    %5 = arith.subf %3, %4 : vector<16x128xf32>
    %c0_4 = arith.constant 0 : index
    %c0_5 = arith.constant 0 : index
    %6 = vector.load %arg5[%c0_4, %c0_5] : memref<8x128xf32, #tpu.memory_space<vmem>>, vector<8x128xf32>
    %7 = arith.mulf %5, %5 : vector<16x128xf32>
    %8 = vector.shape_cast %7 : vector<16x128xf32> to vector<2x8x128xf32>
    %cst = arith.constant dense<0.000000e+00> : vector<8x128xf32>
    %9 = vector.multi_reduction <add>, %8, %cst [0] : vector<2x8x128xf32> to vector<8x128xf32>
    %10 = arith.addf %6, %9 : vector<8x128xf32>
    %c0_6 = arith.constant 0 : index
    %c0_7 = arith.constant 0 : index
    %11 = vector.load %arg5[%c0_6, %c0_7] : memref<8x128xf32, #tpu.memory_space<vmem>>, vector<8x128xf32>
    tpu.vector_store %arg5[%c0_6, %c0_7], %10 {strides = array<i32>} : memref<8x128xf32, #tpu.memory_space<vmem>>, vector<8x128xf32>,
    %c0_i32_8 = arith.constant 0 : i32
    %12 = arith.cmpi eq, %arg1, %c0_i32_8 : i32
    %13 = arith.extui %12 : i1 to i32
    %c0_i32_9 = arith.constant 0 : i32
    %14 = arith.cmpi ne, %13, %c0_i32_9 : i32
    scf.if %14 {
      %c0_10 = arith.constant 0 : index
      %c0_11 = arith.constant 0 : index
      %15 = vector.load %arg5[%c0_10, %c0_11] : memref<8x128xf32, #tpu.memory_space<vmem>>, vector<8x128xf32>
      %cst_12 = arith.constant 4.8828125E-4 : f32
      %16 = vector.broadcast %cst_12 : f32 to vector<8x128xf32>
      %17 = arith.mulf %15, %16 : vector<8x128xf32>
      %c0_13 = arith.constant 0 : index
      %c0_14 = arith.constant 0 : index
      %18 = vector.load %arg4[%c0_13, %c0_14] : memref<8x128xf32, #tpu.memory_space<vmem>>, vector<8x128xf32>
      tpu.vector_store %arg4[%c0_13, %c0_14], %17 {strides = array<i32>} : memref<8x128xf32, #tpu.memory_space<vmem>>, vector<8x128xf32>,
    } else {
    }
    return
  }
  func.func @transform_0(%arg0: i32, %arg1: i32) -> (i32, i32) {
    %c1_i32 = arith.constant 1 : i32
    %0 = arith.muli %arg0, %c1_i32 : i32
    %1 = arith.addi %0, %arg1 : i32
    %c0_i32 = arith.constant 0 : i32
    %2 = arith.minsi %1, %c0_i32 : i32
    %c0_i32_0 = arith.constant 0 : i32
    %c0_i32_1 = arith.constant 0 : i32
    return %2, %c0_i32_0 : i32, i32
  }
  func.func @transform_1(%arg0: i32, %arg1: i32) -> (i32, i32) {
    %c1_i32 = arith.constant 1 : i32
    %0 = arith.muli %arg0, %c1_i32 : i32
    %1 = arith.addi %0, %arg1 : i32
    %c0_i32 = arith.constant 0 : i32
    %2 = arith.minsi %1, %c0_i32 : i32
    %c0_i32_0 = arith.constant 0 : i32
    %c0_i32_1 = arith.constant 0 : i32
    return %2, %c0_i32_0 : i32, i32
  }
  func.func @transform_2(%arg0: i32, %arg1: i32) -> (i32, i32) {
    %c0_i32 = arith.constant 0 : i32
    %c0_i32_0 = arith.constant 0 : i32
    return %arg0, %c0_i32 : i32, i32
  }
}

</mosaic_0001>

<llo_original>
// kernel: tpu_custom_call.1
$region0: #{tpu_custom_call.1}
  #allocation0 [shape = 'u32[]', space=smem, size = 0x4, offset = 0x4, fixed_abs, tag = 'smem constant byte address 0x4 - core index']
  #allocation1 [shape = 'u32[144,128]{1,0:T(1,128)}', space=vmem, size = 0x12000, scoped, tag = 'internal scratch']
  #allocation2 [shape = 'f32[8,128]{1,0:T(8,128)}', space=vmem, size = 0x1000, scoped, tag = 'scratch operand']
  %s0 = inlined_call_operand.hbm [shape: f32[16,128], index: 0, kind: input, shape index: {}]
  %s1 = inlined_call_operand.hbm [shape: f32[16,128], index: 1, kind: input, shape index: {}]
  %s2 = inlined_call_operand.hbm [shape: f32[8,128], index: 2, kind: output, shape index: {}]
  %s3 = sld [smem:[#allocation0]]
  $region34: #{tpu_custom_call.1} parent=0
    _
  %s5 = ssub.s32 1, %s3
  %s6 = scalar_select 0, %s5, %s3
  $region1: #{tpu_custom_call.1} parent=0
    #allocation3 [shape = 'u8[8192]{0}', space=vmem, size = 0x2000, scoped, tag = 'input window, operand 0, single buffered']
    #allocation4 [shape = 's32[1]{0}', space=sflag, size = 0x4, scoped, tag = 'scoped memory for tpu_custom_call.1']
    #allocation5 [shape = 's32[1]{0}', space=sflag, size = 0x4, scoped, tag = 'scoped memory for tpu_custom_call.1']
    #allocation6 [shape = 'u8[8192]{0}', space=vmem, size = 0x2000, scoped, tag = 'input window, operand 1, single buffered']
    #allocation7 [shape = 's32[1]{0}', space=sflag, size = 0x4, scoped, tag = 'scoped memory for tpu_custom_call.1']
    #allocation8 [shape = 'u8[4096]{0}', space=vmem, size = 0x1000, scoped, tag = 'output window, operand 0, single buffered']
    %7 = vsyncpa [#allocation4], 0
    %8 = vsyncpa [#allocation7], 0
    %9 = vsyncpa [#allocation5], 0
    // Predicated region
    $region2: #{tpu_custom_call.1} parent=1 // pred_check
      _
    $region3: #{tpu_custom_call.1} parent=1 // pred_check_branch
      %11 = sbr.rel (0) target = $region5
    $region4: #{tpu_custom_call.1} parent=1 // pred_region
      %s12 = sadd.s32 0, 0
      %p13 = scmp.lt.s32.totalorder %s12, 0
      %s14 = scalar_select %p13, %s12, 0
      %s15 = smul.u32 2, %s14
      %s17 = ssub.s32 256, 256
      %18 = vsyncadd [#allocation4], %s17
      %s19 = smul.addr %s15, 128
      %s20 = scalar_lea.hbm %s0, %s19
      %s21 = sshll.u32 [#allocation3], 4
      %s22 = int_to_ptr.vmem [resolvable:$true] %s21
      %27 = dma.hbm_to_vmem [thread:$0]  %s20, 256, %s22, [#allocation4], 128, 128, 8
    $region5: #{tpu_custom_call.1} parent=1 // pred_fallthru
      _
    // Predicated region
    $region6: #{tpu_custom_call.1} parent=1 // pred_check
      _
    $region7: #{tpu_custom_call.1} parent=1 // pred_check_branch
      %29 = sbr.rel (0) target = $region9
    $region8: #{tpu_custom_call.1} parent=1 // pred_region
      %s30 = sadd.s32 0, 0
      %p31 = scmp.lt.s32.totalorder %s30, 0
      %s32 = scalar_select %p31, %s30, 0
      %s33 = smul.u32 2, %s32
      %s35 = ssub.s32 256, 256
      %36 = vsyncadd [#allocation7], %s35
      %s37 = smul.addr %s33, 128
      %s38 = scalar_lea.hbm %s1, %s37
      %s39 = sshll.u32 [#allocation6], 4
      %s40 = int_to_ptr.vmem [resolvable:$true] %s39
      %45 = dma.hbm_to_vmem [thread:$0]  %s38, 256, %s40, [#allocation7], 128, 128, 8
    $region9: #{tpu_custom_call.1} parent=1 // pred_fallthru
      _
    // Predicated region
    $region10: #{tpu_custom_call.1} parent=1 // pred_check
      _
    $region11: #{tpu_custom_call.1} parent=1 // pred_check_branch
      %47 = sbr.rel (0) target = $region13
    $region12: #{tpu_custom_call.1} parent=1 // pred_region
      %48 = dma.done [#allocation4], 256
    $region13: #{tpu_custom_call.1} parent=1 // pred_fallthru
      _
    // Predicated region
    $region14: #{tpu_custom_call.1} parent=1 // pred_check
      _
    $region15: #{tpu_custom_call.1} parent=1 // pred_check_branch
      %50 = sbr.rel (0) target = $region17
    $region16: #{tpu_custom_call.1} parent=1 // pred_region
      %51 = dma.done [#allocation7], 256
    $region17: #{tpu_custom_call.1} parent=1 // pred_fallthru
      _
    %s52 = sadd.s32 0, 0
    %p53 = scmp.lt.s32.totalorder %s52, 0
    %s54 = scalar_select %p53, %s52, 0
    %s55 = smul.u32 2, %s54
    %s56 = sadd.s32 0, 0
    %p57 = scmp.lt.s32.totalorder %s56, 0
    %s58 = scalar_select %p57, %s56, 0
    %s59 = smul.u32 2, %s58
    %p60 = scmp.eq.s32.totalorder 0, 0
    // Predicated region
    $region18: #{tpu_custom_call.1} parent=1 // pred_check
      %p61 = pneg %p60
    $region19: #{tpu_custom_call.1} parent=1 // pred_check_branch
      %63 = sbr.rel (%p61) target = $region21
    $region20: #{tpu_custom_call.1} parent=1 // pred_region
      %64 = vst [vmem:[#allocation2] sm:$0xff] 0.0
    $region21: #{tpu_custom_call.1} parent=1 // pred_fallthru
      _
    %v65 = vld [vmem:[#allocation3] sm:$0xff]
    %v66 = vld [vmem:[#allocation3 + $0x8] sm:$0xff]
    %v67 = vld [vmem:[#allocation6] sm:$0xff]
    %v68 = vld [vmem:[#allocation6 + $0x8] sm:$0xff]
    %v69 = vsub.f32 %v65, %v67
    %v70 = vsub.f32 %v66, %v68
    %v71 = vld [vmem:[#allocation2] sm:$0xff]
    %v72 = vmul.f32 %v69, %v69
    %v73 = vmul.f32 %v70, %v70
    %v74 = vadd.f32 %v72, %v73
    %v75 = vadd.f32 %v71, %v74
    %76 = vst [vmem:[#allocation2] sm:$0xff] %v75
    // Predicated region
    $region22: #{tpu_custom_call.1} parent=1 // pred_check
      %p77 = pneg %p60
    $region23: #{tpu_custom_call.1} parent=1 // pred_check_branch
      %79 = sbr.rel (%p77) target = $region25
    $region24: #{tpu_custom_call.1} parent=1 // pred_region
      %v80 = vld [vmem:[#allocation2] sm:$0xff]
      %v81 = vmul.f32 %v80, 0.00048828125
      %82 = vst [vmem:[#allocation8] sm:$0xff] %v81
    $region25: #{tpu_custom_call.1} parent=1 // pred_fallthru
      _
    // Predicated region
    $region26: #{tpu_custom_call.1} parent=1 // pred_check
      _
    $region27: #{tpu_custom_call.1} parent=1 // pred_check_branch
      %84 = sbr.rel (0) target = $region29
    $region28: #{tpu_custom_call.1} parent=1 // pred_region
      %s86 = ssub.s32 128, 128
      %87 = vsyncadd [#allocation5], %s86
      %s89 = sshll.u32 [#allocation8], 4
      %s90 = int_to_ptr.vmem [resolvable:$true] %s89
      %92 = dma.vmem_to_hbm [thread:$0]  %s90, 128, %s2, [#allocation5]
    $region29: #{tpu_custom_call.1} parent=1 // pred_fallthru
      _
    // Predicated region
    $region30: #{tpu_custom_call.1} parent=1 // pred_check
      _
    $region31: #{tpu_custom_call.1} parent=1 // pred_check_branch
      %94 = sbr.rel (0) target = $region33
    $region32: #{tpu_custom_call.1} parent=1 // pred_region
      %95 = dma.done [#allocation5], 128
    $region33: #{tpu_custom_call.1} parent=1 // pred_fallthru
      _
    %96 = vsyncpa [#allocation4], 1
    %97 = vsyncpa [#allocation7], 1
    %98 = vsyncpa [#allocation5], 1

</llo_original>
